<compile_context>
chip_gen: v7x
topology: tpu7x:2x2x1
jax: 0.10.0
libtpu: 0.0.40
codegen_flags: <defaults>
</compile_context>

<pallas_src>
from functools import partial

import jax
import jax.numpy as jnp
from jax.experimental import pallas as pl
from jax.experimental.pallas import tpu as pltpu


def _slim_gather_kernel(tok_ref, map_ref, w_ref, o_ref, *, tn, splits):
    # tok_ref: SMEM (Np,)            int32   flattened (padded) token ids
    # map_ref: SMEM (vocab*splits,)  int32   flattened token -> sub-index map
    # w_ref:   VMEM (M, E)           f32     slim weight table (resident)
    # o_ref:   VMEM (TN, D)          f32     lane-dense output rows, D = splits*E
    base = pl.program_id(0) * tn

    def body(t, carry):
        tok = tok_ref[base + t]                       # SMEM scalar read
        # Gather the `splits` sub-rows for this token (direct dynamic-slice
        # gather from the VMEM-resident table; indices are in-range by
        # construction of emb_map -- note there is no runtime OOB check).
        parts = [
            w_ref[pl.ds(map_ref[tok * splits + s], 1), :]   # (1, E)
            for s in range(splits)
        ]
        row = jnp.concatenate(parts, axis=1)          # (1, D) -- one wide store
        o_ref[pl.ds(t, 1), :] = row.astype(o_ref.dtype)
        return carry

    jax.lax.fori_loop(0, tn, body, 0, unroll=True if tn <= 32 else 8)


def slim_embedding_forward(sentences, emb_map, weight, splits, *, tile_tokens=256):
    """sentences: (B, L) int32 token ids in [0, vocab_size)."""
    B, L = sentences.shape
    M, E = weight.shape
    D = E * splits

    n_tok = B * L
    # Token tile: multiple of 8 (sublane granularity), capped by tile_tokens.
    tn = max(8, (min(tile_tokens, n_tok) // 8) * 8)
    n_pad = pl.cdiv(n_tok, tn) * tn                   # pad so the grid covers N

    tok_flat = sentences.reshape(-1).astype(jnp.int32)
    if n_pad != n_tok:
        tok_flat = jnp.pad(tok_flat, (0, n_pad - n_tok))  # pad with token 0
    map_flat = emb_map.reshape(-1).astype(jnp.int32)  # 1-D for SMEM friendliness

    out = pl.pallas_call(
        partial(_slim_gather_kernel, tn=tn, splits=splits),
        out_shape=jax.ShapeDtypeStruct((n_pad, D), weight.dtype),
        grid_spec=pltpu.PrefetchScalarGridSpec(
            num_scalar_prefetch=2,                    # tok_flat, map_flat -> SMEM
            grid=(n_pad // tn,),
            in_specs=[
                # Full slim table resident in VMEM, constant block index.
                pl.BlockSpec((M, E), lambda i, tok, mp: (0, 0)),
            ],
            out_specs=pl.BlockSpec((tn, D), lambda i, tok, mp: (i, 0)),
        ),
        compiler_params=pltpu.CompilerParams(
            # Independent token tiles: shard across TCs on multi-core chips.
            dimension_semantics=("parallel",),
            # Explicit scoped-VMEM ceiling (v5e default is only 16 MiB; keep
            # headroom under v7x's 64 MiB physical VMEM).
            vmem_limit_bytes=48 * 1024 * 1024,
        ),
    )(tok_flat, map_flat, weight)

    return out[:n_tok].reshape(B, L, D)


def make_slim_embedding_params(key, vocab_size, word_dim, splits, factorM,
                               padding_idx=None):
    """Deterministic parameter construction matching SlimEmbedding.__init__."""
    assert word_dim % splits == 0
    num_embeddings = int(round(vocab_size * factorM, 0))
    embedding_dim = word_dim // splits
    k_w, k_m = jax.random.split(key)
    weight = jax.random.normal(
        k_w, (num_embeddings, embedding_dim), dtype=jnp.float32)
    if padding_idx is not None:
        # TODO(synk): padding_idx zeroes a shared slim-table row; any token whose
        # map entry collides with that row also reads zeros (matches reference
        # forward math, but padding is a token-level concept in nn.Embedding).
        weight = weight.at[padding_idx].set(0.0)
    emb_map = jax.random.randint(
        k_m, (vocab_size, splits), 0, num_embeddings, dtype=jnp.int32)
    return weight, emb_map
    # TODO(synk): max_norm renormalization (None by default) is not implemented.


if __name__ == "__main__":
    vocab_size = 50
    word_dim = 32
    splits = 4
    factorM = 0.2       # num_embeddings = round(50 * 0.2) = 10, E = 8
    B, L = 2, 9         # 18 tokens -> exercises the cdiv/padding path with tn=8

    key = jax.random.PRNGKey(0)
    k_params, k_sent = jax.random.split(key)
    weight, emb_map = make_slim_embedding_params(
        k_params, vocab_size, word_dim, splits, factorM, padding_idx=None)

    sentences = jax.random.randint(
        k_sent, (B, L), 0, vocab_size, dtype=jnp.int32)

    out = slim_embedding_forward(sentences, emb_map, weight, splits,
                                 tile_tokens=8)
    out = jax.block_until_ready(out)

    # Pure-JAX reference for correctness.
    ref = weight[emb_map[sentences]].reshape(B, L, word_dim)
    assert out.shape == (B, L, word_dim), out.shape
    assert jnp.allclose(out, ref, atol=1e-5, rtol=1e-5), "mismatch vs reference"

    print("KERNEL_OK")
</pallas_src>

<mosaic_0001>
module attributes {stable_mosaic.version = 11 : i64} {
  func.func @_slim_gather_kernel(%arg0: i32, %arg1: memref<24xi32, #tpu.memory_space<smem>>, %arg2: memref<200xi32, #tpu.memory_space<smem>>, %arg3: memref<10x8xf32, #tpu.memory_space<vmem>>, %arg4: memref<8x32xf32, #tpu.memory_space<vmem>>) attributes {dimension_semantics = [#tpu.dimension_semantics<parallel>], iteration_bounds = array<i64: 3>, scalar_prefetch = 2 : i64, scratch_operands = 0 : i64, tpu.core_type = #tpu.core_type<tc>, window_params = [{pipeline_mode = #tpu.pipeline_mode<synchronous>, transform_indices = @transform_0, window_bounds = array<i64: 10, 8>}, {transform_indices = @transform_1, window_bounds = array<i64: 8, 32>}]} {
    %c8_i32 = arith.constant 8 : i32
    %0 = arith.muli %arg0, %c8_i32 : i32
    %c0_i32 = arith.constant 0 : i32
    %1 = arith.addi %0, %c0_i32 : i32
    %2 = arith.index_cast %1 : i32 to index
    %3 = memref.load %arg1[%2] : memref<24xi32, #tpu.memory_space<smem>>
    %c4_i32 = arith.constant 4 : i32
    %4 = arith.muli %3, %c4_i32 : i32
    %c0_i32_0 = arith.constant 0 : i32
    %5 = arith.addi %4, %c0_i32_0 : i32
    %6 = arith.index_cast %5 : i32 to index
    %7 = memref.load %arg2[%6] : memref<200xi32, #tpu.memory_space<smem>>
    %8 = arith.index_cast %7 : i32 to index
    %c0 = arith.constant 0 : index
    %9 = vector.load %arg3[%8, %c0] : memref<10x8xf32, #tpu.memory_space<vmem>>, vector<1x8xf32>
    %c4_i32_1 = arith.constant 4 : i32
    %10 = arith.muli %3, %c4_i32_1 : i32
    %c1_i32 = arith.constant 1 : i32
    %11 = arith.addi %10, %c1_i32 : i32
    %12 = arith.index_cast %11 : i32 to index
    %13 = memref.load %arg2[%12] : memref<200xi32, #tpu.memory_space<smem>>
    %14 = arith.index_cast %13 : i32 to index
    %c0_2 = arith.constant 0 : index
    %15 = vector.load %arg3[%14, %c0_2] : memref<10x8xf32, #tpu.memory_space<vmem>>, vector<1x8xf32>
    %c4_i32_3 = arith.constant 4 : i32
    %16 = arith.muli %3, %c4_i32_3 : i32
    %c2_i32 = arith.constant 2 : i32
    %17 = arith.addi %16, %c2_i32 : i32
    %18 = arith.index_cast %17 : i32 to index
    %19 = memref.load %arg2[%18] : memref<200xi32, #tpu.memory_space<smem>>
    %20 = arith.index_cast %19 : i32 to index
    %c0_4 = arith.constant 0 : index
    %21 = vector.load %arg3[%20, %c0_4] : memref<10x8xf32, #tpu.memory_space<vmem>>, vector<1x8xf32>
    %c4_i32_5 = arith.constant 4 : i32
    %22 = arith.muli %3, %c4_i32_5 : i32
    %c3_i32 = arith.constant 3 : i32
    %23 = arith.addi %22, %c3_i32 : i32
    %24 = arith.index_cast %23 : i32 to index
    %25 = memref.load %arg2[%24] : memref<200xi32, #tpu.memory_space<smem>>
    %26 = arith.index_cast %25 : i32 to index
    %c0_6 = arith.constant 0 : index
    %27 = vector.load %arg3[%26, %c0_6] : memref<10x8xf32, #tpu.memory_space<vmem>>, vector<1x8xf32>
    %28 = tpu.concatenate %9, %15, %21, %27 in 1 : vector<1x8xf32>, vector<1x8xf32>, vector<1x8xf32>, vector<1x8xf32> -> vector<1x32xf32>
    %29 = arith.index_cast %c0_i32 : i32 to index
    %c0_7 = arith.constant 0 : index
    %30 = vector.load %arg4[%29, %c0_7] : memref<8x32xf32, #tpu.memory_space<vmem>>, vector<1x32xf32>
    tpu.vector_store %arg4[%29, %c0_7], %28 {strides = array<i32>} : memref<8x32xf32, #tpu.memory_space<vmem>>, vector<1x32xf32>,
    %c1_i32_8 = arith.constant 1 : i32
    %31 = arith.addi %0, %c1_i32_8 : i32
    %32 = arith.index_cast %31 : i32 to index
    %33 = memref.load %arg1[%32] : memref<24xi32, #tpu.memory_space<smem>>
    %c4_i32_9 = arith.constant 4 : i32
    %34 = arith.muli %33, %c4_i32_9 : i32
    %c0_i32_10 = arith.constant 0 : i32
    %35 = arith.addi %34, %c0_i32_10 : i32
    %36 = arith.index_cast %35 : i32 to index
    %37 = memref.load %arg2[%36] : memref<200xi32, #tpu.memory_space<smem>>
    %38 = arith.index_cast %37 : i32 to index
    %c0_11 = arith.constant 0 : index
    %39 = vector.load %arg3[%38, %c0_11] : memref<10x8xf32, #tpu.memory_space<vmem>>, vector<1x8xf32>
    %c4_i32_12 = arith.constant 4 : i32
    %40 = arith.muli %33, %c4_i32_12 : i32
    %c1_i32_13 = arith.constant 1 : i32
    %41 = arith.addi %40, %c1_i32_13 : i32
    %42 = arith.index_cast %41 : i32 to index
    %43 = memref.load %arg2[%42] : memref<200xi32, #tpu.memory_space<smem>>
    %44 = arith.index_cast %43 : i32 to index
    %c0_14 = arith.constant 0 : index
    %45 = vector.load %arg3[%44, %c0_14] : memref<10x8xf32, #tpu.memory_space<vmem>>, vector<1x8xf32>
    %c4_i32_15 = arith.constant 4 : i32
    %46 = arith.muli %33, %c4_i32_15 : i32
    %c2_i32_16 = arith.constant 2 : i32
    %47 = arith.addi %46, %c2_i32_16 : i32
    %48 = arith.index_cast %47 : i32 to index
    %49 = memref.load %arg2[%48] : memref<200xi32, #tpu.memory_space<smem>>
    %50 = arith.index_cast %49 : i32 to index
    %c0_17 = arith.constant 0 : index
    %51 = vector.load %arg3[%50, %c0_17] : memref<10x8xf32, #tpu.memory_space<vmem>>, vector<1x8xf32>
    %c4_i32_18 = arith.constant 4 : i32
    %52 = arith.muli %33, %c4_i32_18 : i32
    %c3_i32_19 = arith.constant 3 : i32
    %53 = arith.addi %52, %c3_i32_19 : i32
    %54 = arith.index_cast %53 : i32 to index
    %55 = memref.load %arg2[%54] : memref<200xi32, #tpu.memory_space<smem>>
    %56 = arith.index_cast %55 : i32 to index
    %c0_20 = arith.constant 0 : index
    %57 = vector.load %arg3[%56, %c0_20] : memref<10x8xf32, #tpu.memory_space<vmem>>, vector<1x8xf32>
    %58 = tpu.concatenate %39, %45, %51, %57 in 1 : vector<1x8xf32>, vector<1x8xf32>, vector<1x8xf32>, vector<1x8xf32> -> vector<1x32xf32>
    %59 = arith.index_cast %c1_i32_8 : i32 to index
    %c0_21 = arith.constant 0 : index
    %60 = vector.load %arg4[%59, %c0_21] : memref<8x32xf32, #tpu.memory_space<vmem>>, vector<1x32xf32>
    tpu.vector_store %arg4[%59, %c0_21], %58 {strides = array<i32>} : memref<8x32xf32, #tpu.memory_space<vmem>>, vector<1x32xf32>,
    %c2_i32_22 = arith.constant 2 : i32
    %61 = arith.addi %0, %c2_i32_22 : i32
    %62 = arith.index_cast %61 : i32 to index
    %63 = memref.load %arg1[%62] : memref<24xi32, #tpu.memory_space<smem>>
    %c4_i32_23 = arith.constant 4 : i32
    %64 = arith.muli %63, %c4_i32_23 : i32
    %c0_i32_24 = arith.constant 0 : i32
    %65 = arith.addi %64, %c0_i32_24 : i32
    %66 = arith.index_cast %65 : i32 to index
    %67 = memref.load %arg2[%66] : memref<200xi32, #tpu.memory_space<smem>>
    %68 = arith.index_cast %67 : i32 to index
    %c0_25 = arith.constant 0 : index
    %69 = vector.load %arg3[%68, %c0_25] : memref<10x8xf32, #tpu.memory_space<vmem>>, vector<1x8xf32>
    %c4_i32_26 = arith.constant 4 : i32
    %70 = arith.muli %63, %c4_i32_26 : i32
    %c1_i32_27 = arith.constant 1 : i32
    %71 = arith.addi %70, %c1_i32_27 : i32
    %72 = arith.index_cast %71 : i32 to index
    %73 = memref.load %arg2[%72] : memref<200xi32, #tpu.memory_space<smem>>
    %74 = arith.index_cast %73 : i32 to index
    %c0_28 = arith.constant 0 : index
    %75 = vector.load %arg3[%74, %c0_28] : memref<10x8xf32, #tpu.memory_space<vmem>>, vector<1x8xf32>
    %c4_i32_29 = arith.constant 4 : i32
    %76 = arith.muli %63, %c4_i32_29 : i32
    %c2_i32_30 = arith.constant 2 : i32
    %77 = arith.addi %76, %c2_i32_30 : i32
    %78 = arith.index_cast %77 : i32 to index
    %79 = memref.load %arg2[%78] : memref<200xi32, #tpu.memory_space<smem>>
    %80 = arith.index_cast %79 : i32 to index
    %c0_31 = arith.constant 0 : index
    %81 = vector.load %arg3[%80, %c0_31] : memref<10x8xf32, #tpu.memory_space<vmem>>, vector<1x8xf32>
    %c4_i32_32 = arith.constant 4 : i32
    %82 = arith.muli %63, %c4_i32_32 : i32
    %c3_i32_33 = arith.constant 3 : i32
    %83 = arith.addi %82, %c3_i32_33 : i32
    %84 = arith.index_cast %83 : i32 to index
    %85 = memref.load %arg2[%84] : memref<200xi32, #tpu.memory_space<smem>>
    %86 = arith.index_cast %85 : i32 to index
    %c0_34 = arith.constant 0 : index
    %87 = vector.load %arg3[%86, %c0_34] : memref<10x8xf32, #tpu.memory_space<vmem>>, vector<1x8xf32>
    %88 = tpu.concatenate %69, %75, %81, %87 in 1 : vector<1x8xf32>, vector<1x8xf32>, vector<1x8xf32>, vector<1x8xf32> -> vector<1x32xf32>
    %89 = arith.index_cast %c2_i32_22 : i32 to index
    %c0_35 = arith.constant 0 : index
    %90 = vector.load %arg4[%89, %c0_35] : memref<8x32xf32, #tpu.memory_space<vmem>>, vector<1x32xf32>
    tpu.vector_store %arg4[%89, %c0_35], %88 {strides = array<i32>} : memref<8x32xf32, #tpu.memory_space<vmem>>, vector<1x32xf32>,
    %c3_i32_36 = arith.constant 3 : i32
    %91 = arith.addi %0, %c3_i32_36 : i32
    %92 = arith.index_cast %91 : i32 to index
    %93 = memref.load %arg1[%92] : memref<24xi32, #tpu.memory_space<smem>>
    %c4_i32_37 = arith.constant 4 : i32
    %94 = arith.muli %93, %c4_i32_37 : i32
    %c0_i32_38 = arith.constant 0 : i32
    %95 = arith.addi %94, %c0_i32_38 : i32
    %96 = arith.index_cast %95 : i32 to index
    %97 = memref.load %arg2[%96] : memref<200xi32, #tpu.memory_space<smem>>
    %98 = arith.index_cast %97 : i32 to index
    %c0_39 = arith.constant 0 : index
    %99 = vector.load %arg3[%98, %c0_39] : memref<10x8xf32, #tpu.memory_space<vmem>>, vector<1x8xf32>
    %c4_i32_40 = arith.constant 4 : i32
    %100 = arith.muli %93, %c4_i32_40 : i32
    %c1_i32_41 = arith.constant 1 : i32
    %101 = arith.addi %100, %c1_i32_41 : i32
    %102 = arith.index_cast %101 : i32 to index
    %103 = memref.load %arg2[%102] : memref<200xi32, #tpu.memory_space<smem>>
    %104 = arith.index_cast %103 : i32 to index
    %c0_42 = arith.constant 0 : index
    %105 = vector.load %arg3[%104, %c0_42] : memref<10x8xf32, #tpu.memory_space<vmem>>, vector<1x8xf32>
    %c4_i32_43 = arith.constant 4 : i32
    %106 = arith.muli %93, %c4_i32_43 : i32
    %c2_i32_44 = arith.constant 2 : i32
    %107 = arith.addi %106, %c2_i32_44 : i32
    %108 = arith.index_cast %107 : i32 to index
    %109 = memref.load %arg2[%108] : memref<200xi32, #tpu.memory_space<smem>>
    %110 = arith.index_cast %109 : i32 to index
    %c0_45 = arith.constant 0 : index
    %111 = vector.load %arg3[%110, %c0_45] : memref<10x8xf32, #tpu.memory_space<vmem>>, vector<1x8xf32>
    %c4_i32_46 = arith.constant 4 : i32
    %112 = arith.muli %93, %c4_i32_46 : i32
    %c3_i32_47 = arith.constant 3 : i32
    %113 = arith.addi %112, %c3_i32_47 : i32
    %114 = arith.index_cast %113 : i32 to index
    %115 = memref.load %arg2[%114] : memref<200xi32, #tpu.memory_space<smem>>
    %116 = arith.index_cast %115 : i32 to index
    %c0_48 = arith.constant 0 : index
    %117 = vector.load %arg3[%116, %c0_48] : memref<10x8xf32, #tpu.memory_space<vmem>>, vector<1x8xf32>
    %118 = tpu.concatenate %99, %105, %111, %117 in 1 : vector<1x8xf32>, vector<1x8xf32>, vector<1x8xf32>, vector<1x8xf32> -> vector<1x32xf32>
    %119 = arith.index_cast %c3_i32_36 : i32 to index
    %c0_49 = arith.constant 0 : index
    %120 = vector.load %arg4[%119, %c0_49] : memref<8x32xf32, #tpu.memory_space<vmem>>, vector<1x32xf32>
    tpu.vector_store %arg4[%119, %c0_49], %118 {strides = array<i32>} : memref<8x32xf32, #tpu.memory_space<vmem>>, vector<1x32xf32>,
    %c4_i32_50 = arith.constant 4 : i32
    %121 = arith.addi %0, %c4_i32_50 : i32
    %122 = arith.index_cast %121 : i32 to index
    %123 = memref.load %arg1[%122] : memref<24xi32, #tpu.memory_space<smem>>
    %c4_i32_51 = arith.constant 4 : i32
    %124 = arith.muli %123, %c4_i32_51 : i32
    %c0_i32_52 = arith.constant 0 : i32
    %125 = arith.addi %124, %c0_i32_52 : i32
    %126 = arith.index_cast %125 : i32 to index
    %127 = memref.load %arg2[%126] : memref<200xi32, #tpu.memory_space<smem>>
    %128 = arith.index_cast %127 : i32 to index
    %c0_53 = arith.constant 0 : index
    %129 = vector.load %arg3[%128, %c0_53] : memref<10x8xf32, #tpu.memory_space<vmem>>, vector<1x8xf32>
    %c4_i32_54 = arith.constant 4 : i32
    %130 = arith.muli %123, %c4_i32_54 : i32
    %c1_i32_55 = arith.constant 1 : i32
    %131 = arith.addi %130, %c1_i32_55 : i32
    %132 = arith.index_cast %131 : i32 to index
    %133 = memref.load %arg2[%132] : memref<200xi32, #tpu.memory_space<smem>>
    %134 = arith.index_cast %133 : i32 to index
    %c0_56 = arith.constant 0 : index
    %135 = vector.load %arg3[%134, %c0_56] : memref<10x8xf32, #tpu.memory_space<vmem>>, vector<1x8xf32>
    %c4_i32_57 = arith.constant 4 : i32
    %136 = arith.muli %123, %c4_i32_57 : i32
    %c2_i32_58 = arith.constant 2 : i32
    %137 = arith.addi %136, %c2_i32_58 : i32
    %138 = arith.index_cast %137 : i32 to index
    %139 = memref.load %arg2[%138] : memref<200xi32, #tpu.memory_space<smem>>
    %140 = arith.index_cast %139 : i32 to index
    %c0_59 = arith.constant 0 : index
    %141 = vector.load %arg3[%140, %c0_59] : memref<10x8xf32, #tpu.memory_space<vmem>>, vector<1x8xf32>
    %c4_i32_60 = arith.constant 4 : i32
    %142 = arith.muli %123, %c4_i32_60 : i32
    %c3_i32_61 = arith.constant 3 : i32
    %143 = arith.addi %142, %c3_i32_61 : i32
    %144 = arith.index_cast %143 : i32 to index
    %145 = memref.load %arg2[%144] : memref<200xi32, #tpu.memory_space<smem>>
    %146 = arith.index_cast %145 : i32 to index
    %c0_62 = arith.constant 0 : index
    %147 = vector.load %arg3[%146, %c0_62] : memref<10x8xf32, #tpu.memory_space<vmem>>, vector<1x8xf32>
    %148 = tpu.concatenate %129, %135, %141, %147 in 1 : vector<1x8xf32>, vector<1x8xf32>, vector<1x8xf32>, vector<1x8xf32> -> vector<1x32xf32>
    %149 = arith.index_cast %c4_i32_50 : i32 to index
    %c0_63 = arith.constant 0 : index
    %150 = vector.load %arg4[%149, %c0_63] : memref<8x32xf32, #tpu.memory_space<vmem>>, vector<1x32xf32>
    tpu.vector_store %arg4[%149, %c0_63], %148 {strides = array<i32>} : memref<8x32xf32, #tpu.memory_space<vmem>>, vector<1x32xf32>,
    %c5_i32 = arith.constant 5 : i32
    %151 = arith.addi %0, %c5_i32 : i32
    %152 = arith.index_cast %151 : i32 to index
    %153 = memref.load %arg1[%152] : memref<24xi32, #tpu.memory_space<smem>>
    %c4_i32_64 = arith.constant 4 : i32
    %154 = arith.muli %153, %c4_i32_64 : i32
    %c0_i32_65 = arith.constant 0 : i32
    %155 = arith.addi %154, %c0_i32_65 : i32
    %156 = arith.index_cast %155 : i32 to index
    %157 = memref.load %arg2[%156] : memref<200xi32, #tpu.memory_space<smem>>
    %158 = arith.index_cast %157 : i32 to index
    %c0_66 = arith.constant 0 : index
    %159 = vector.load %arg3[%158, %c0_66] : memref<10x8xf32, #tpu.memory_space<vmem>>, vector<1x8xf32>
    %c4_i32_67 = arith.constant 4 : i32
    %160 = arith.muli %153, %c4_i32_67 : i32
    %c1_i32_68 = arith.constant 1 : i32
    %161 = arith.addi %160, %c1_i32_68 : i32
    %162 = arith.index_cast %161 : i32 to index
    %163 = memref.load %arg2[%162] : memref<200xi32, #tpu.memory_space<smem>>
    %164 = arith.index_cast %163 : i32 to index
    %c0_69 = arith.constant 0 : index
    %165 = vector.load %arg3[%164, %c0_69] : memref<10x8xf32, #tpu.memory_space<vmem>>, vector<1x8xf32>
    %c4_i32_70 = arith.constant 4 : i32
    %166 = arith.muli %153, %c4_i32_70 : i32
    %c2_i32_71 = arith.constant 2 : i32
    %167 = arith.addi %166, %c2_i32_71 : i32
    %168 = arith.index_cast %167 : i32 to index
    %169 = memref.load %arg2[%168] : memref<200xi32, #tpu.memory_space<smem>>
    %170 = arith.index_cast %169 : i32 to index
    %c0_72 = arith.constant 0 : index
    %171 = vector.load %arg3[%170, %c0_72] : memref<10x8xf32, #tpu.memory_space<vmem>>, vector<1x8xf32>
    %c4_i32_73 = arith.constant 4 : i32
    %172 = arith.muli %153, %c4_i32_73 : i32
    %c3_i32_74 = arith.constant 3 : i32
    %173 = arith.addi %172, %c3_i32_74 : i32
    %174 = arith.index_cast %173 : i32 to index
    %175 = memref.load %arg2[%174] : memref<200xi32, #tpu.memory_space<smem>>
    %176 = arith.index_cast %175 : i32 to index
    %c0_75 = arith.constant 0 : index
    %177 = vector.load %arg3[%176, %c0_75] : memref<10x8xf32, #tpu.memory_space<vmem>>, vector<1x8xf32>
    %178 = tpu.concatenate %159, %165, %171, %177 in 1 : vector<1x8xf32>, vector<1x8xf32>, vector<1x8xf32>, vector<1x8xf32> -> vector<1x32xf32>
    %179 = arith.index_cast %c5_i32 : i32 to index
    %c0_76 = arith.constant 0 : index
    %180 = vector.load %arg4[%179, %c0_76] : memref<8x32xf32, #tpu.memory_space<vmem>>, vector<1x32xf32>
    tpu.vector_store %arg4[%179, %c0_76], %178 {strides = array<i32>} : memref<8x32xf32, #tpu.memory_space<vmem>>, vector<1x32xf32>,
    %c6_i32 = arith.constant 6 : i32
    %181 = arith.addi %0, %c6_i32 : i32
    %182 = arith.index_cast %181 : i32 to index
    %183 = memref.load %arg1[%182] : memref<24xi32, #tpu.memory_space<smem>>
    %c4_i32_77 = arith.constant 4 : i32
    %184 = arith.muli %183, %c4_i32_77 : i32
    %c0_i32_78 = arith.constant 0 : i32
    %185 = arith.addi %184, %c0_i32_78 : i32
    %186 = arith.index_cast %185 : i32 to index
    %187 = memref.load %arg2[%186] : memref<200xi32, #tpu.memory_space<smem>>
    %188 = arith.index_cast %187 : i32 to index
    %c0_79 = arith.constant 0 : index
    %189 = vector.load %arg3[%188, %c0_79] : memref<10x8xf32, #tpu.memory_space<vmem>>, vector<1x8xf32>
    %c4_i32_80 = arith.constant 4 : i32
    %190 = arith.muli %183, %c4_i32_80 : i32
    %c1_i32_81 = arith.constant 1 : i32
    %191 = arith.addi %190, %c1_i32_81 : i32
    %192 = arith.index_cast %191 : i32 to index
    %193 = memref.load %arg2[%192] : memref<200xi32, #tpu.memory_space<smem>>
    %194 = arith.index_cast %193 : i32 to index
    %c0_82 = arith.constant 0 : index
    %195 = vector.load %arg3[%194, %c0_82] : memref<10x8xf32, #tpu.memory_space<vmem>>, vector<1x8xf32>
    %c4_i32_83 = arith.constant 4 : i32
    %196 = arith.muli %183, %c4_i32_83 : i32
    %c2_i32_84 = arith.constant 2 : i32
    %197 = arith.addi %196, %c2_i32_84 : i32
    %198 = arith.index_cast %197 : i32 to index
    %199 = memref.load %arg2[%198] : memref<200xi32, #tpu.memory_space<smem>>
    %200 = arith.index_cast %199 : i32 to index
    %c0_85 = arith.constant 0 : index
    %201 = vector.load %arg3[%200, %c0_85] : memref<10x8xf32, #tpu.memory_space<vmem>>, vector<1x8xf32>
    %c4_i32_86 = arith.constant 4 : i32
    %202 = arith.muli %183, %c4_i32_86 : i32
    %c3_i32_87 = arith.constant 3 : i32
    %203 = arith.addi %202, %c3_i32_87 : i32
    %204 = arith.index_cast %203 : i32 to index
    %205 = memref.load %arg2[%204] : memref<200xi32, #tpu.memory_space<smem>>
    %206 = arith.index_cast %205 : i32 to index
    %c0_88 = arith.constant 0 : index
    %207 = vector.load %arg3[%206, %c0_88] : memref<10x8xf32, #tpu.memory_space<vmem>>, vector<1x8xf32>
    %208 = tpu.concatenate %189, %195, %201, %207 in 1 : vector<1x8xf32>, vector<1x8xf32>, vector<1x8xf32>, vector<1x8xf32> -> vector<1x32xf32>
    %209 = arith.index_cast %c6_i32 : i32 to index
    %c0_89 = arith.constant 0 : index
    %210 = vector.load %arg4[%209, %c0_89] : memref<8x32xf32, #tpu.memory_space<vmem>>, vector<1x32xf32>
    tpu.vector_store %arg4[%209, %c0_89], %208 {strides = array<i32>} : memref<8x32xf32, #tpu.memory_space<vmem>>, vector<1x32xf32>,
    %c7_i32 = arith.constant 7 : i32
    %211 = arith.addi %0, %c7_i32 : i32
    %212 = arith.index_cast %211 : i32 to index
    %213 = memref.load %arg1[%212] : memref<24xi32, #tpu.memory_space<smem>>
    %c4_i32_90 = arith.constant 4 : i32
    %214 = arith.muli %213, %c4_i32_90 : i32
    %c0_i32_91 = arith.constant 0 : i32
    %215 = arith.addi %214, %c0_i32_91 : i32
    %216 = arith.index_cast %215 : i32 to index
    %217 = memref.load %arg2[%216] : memref<200xi32, #tpu.memory_space<smem>>
    %218 = arith.index_cast %217 : i32 to index
    %c0_92 = arith.constant 0 : index
    %219 = vector.load %arg3[%218, %c0_92] : memref<10x8xf32, #tpu.memory_space<vmem>>, vector<1x8xf32>
    %c4_i32_93 = arith.constant 4 : i32
    %220 = arith.muli %213, %c4_i32_93 : i32
    %c1_i32_94 = arith.constant 1 : i32
    %221 = arith.addi %220, %c1_i32_94 : i32
    %222 = arith.index_cast %221 : i32 to index
    %223 = memref.load %arg2[%222] : memref<200xi32, #tpu.memory_space<smem>>
    %224 = arith.index_cast %223 : i32 to index
    %c0_95 = arith.constant 0 : index
    %225 = vector.load %arg3[%224, %c0_95] : memref<10x8xf32, #tpu.memory_space<vmem>>, vector<1x8xf32>
    %c4_i32_96 = arith.constant 4 : i32
    %226 = arith.muli %213, %c4_i32_96 : i32
    %c2_i32_97 = arith.constant 2 : i32
    %227 = arith.addi %226, %c2_i32_97 : i32
    %228 = arith.index_cast %227 : i32 to index
    %229 = memref.load %arg2[%228] : memref<200xi32, #tpu.memory_space<smem>>
    %230 = arith.index_cast %229 : i32 to index
    %c0_98 = arith.constant 0 : index
    %231 = vector.load %arg3[%230, %c0_98] : memref<10x8xf32, #tpu.memory_space<vmem>>, vector<1x8xf32>
    %c4_i32_99 = arith.constant 4 : i32
    %232 = arith.muli %213, %c4_i32_99 : i32
    %c3_i32_100 = arith.constant 3 : i32
    %233 = arith.addi %232, %c3_i32_100 : i32
    %234 = arith.index_cast %233 : i32 to index
    %235 = memref.load %arg2[%234] : memref<200xi32, #tpu.memory_space<smem>>
    %236 = arith.index_cast %235 : i32 to index
    %c0_101 = arith.constant 0 : index
    %237 = vector.load %arg3[%236, %c0_101] : memref<10x8xf32, #tpu.memory_space<vmem>>, vector<1x8xf32>
    %238 = tpu.concatenate %219, %225, %231, %237 in 1 : vector<1x8xf32>, vector<1x8xf32>, vector<1x8xf32>, vector<1x8xf32> -> vector<1x32xf32>
    %239 = arith.index_cast %c7_i32 : i32 to index
    %c0_102 = arith.constant 0 : index
    %240 = vector.load %arg4[%239, %c0_102] : memref<8x32xf32, #tpu.memory_space<vmem>>, vector<1x32xf32>
    tpu.vector_store %arg4[%239, %c0_102], %238 {strides = array<i32>} : memref<8x32xf32, #tpu.memory_space<vmem>>, vector<1x32xf32>,
    %c8_i32_103 = arith.constant 8 : i32
    return
  }
  func.func @transform_0(%arg0: i32, %arg1: memref<24xi32, #tpu.memory_space<smem>>, %arg2: memref<200xi32, #tpu.memory_space<smem>>) -> (i32, i32) {
    %c0_i32 = arith.constant 0 : i32
    %c0_i32_0 = arith.constant 0 : i32
    %c0_i32_1 = arith.constant 0 : i32
    return %c0_i32, %c0_i32_0 : i32, i32
  }
  func.func @transform_1(%arg0: i32, %arg1: memref<24xi32, #tpu.memory_space<smem>>, %arg2: memref<200xi32, #tpu.memory_space<smem>>) -> (i32, i32) {
    %c0_i32 = arith.constant 0 : i32
    %c0_i32_0 = arith.constant 0 : i32
    return %arg0, %c0_i32 : i32, i32
  }
}

</mosaic_0001>

<llo_original>
// kernel: tpu_custom_call.1
$region0: #{tpu_custom_call.1}
  #allocation0 [shape = 'u32[]', space=smem, size = 0x4, offset = 0x4, fixed_abs, tag = 'smem constant byte address 0x4 - core index']
  #allocation1 [shape = 'u32[144,128]{1,0:T(1,128)}', space=vmem, size = 0x12000, scoped, tag = 'internal scratch']
  #allocation2 [shape = 's32[1]{0}', space=sflag, size = 0x4, scoped, tag = 'scoped memory for tpu_custom_call.1']
  #allocation3 [shape = 'u8[512]{0}', space=smem, size = 0x200, scoped, tag = 'prefetched SMEM operand 0']
  #allocation4 [shape = 'u8[1024]{0}', space=smem, size = 0x400, scoped, tag = 'prefetched SMEM operand 1']
  %s0 = inlined_call_operand.vmem [shape: s32[24], index: 0, kind: input, shape index: {}]
  %s1 = inlined_call_operand.vmem [shape: s32[200], index: 1, kind: input, shape index: {}]
  %s2 = inlined_call_operand.vmem [shape: f32[10,8], index: 2, kind: input, shape index: {}]
  %s3 = inlined_call_operand.hbm [shape: f32[24,32], index: 3, kind: output, shape index: {}]
  %s4 = sld [smem:[#allocation0]]
  $region37: #{tpu_custom_call.1} parent=0
    _
  %s6 = ssub.s32 1, %s4
  %s7 = scalar_select 0, %s6, %s4
  %s8 = sshll.u32 %s0, 4
  %s9 = int_to_ptr.vmem [resolvable:$true] %s8
  %11 = dma.vmem_to_smem %s9, 16, [#allocation3], [#allocation2]
  %s12 = sshll.u32 %s1, 4
  %s13 = int_to_ptr.vmem [resolvable:$true] %s12
  %15 = dma.vmem_to_smem %s13, 32, [#allocation4], [#allocation2]
  %16 = dma.done [#allocation2], 48
  %17 = sfence
  $region1: #{tpu_custom_call.1} parent=0
    #allocation5 [shape = 'u8[8192]{0}', space=vmem, size = 0x2000, scoped, tag = 'output window, operand 0']
    #allocation6 [shape = 's32[2]{0}', space=sflag, size = 0x8, scoped, tag = 'scoped memory for tpu_custom_call.1']
    %18 = vsyncpa [#allocation6], 0
    %s19 = scalar_lea.sflag [#allocation6], 1
    %20 = vsyncpa %s19, 0
    loop: start=0, step=1, limit=5
    $region2: #{tpu_custom_call.1} parent=1 // loop_pre_header
      _
    $region3: #{tpu_custom_call.1} parent=1 // loop_header
      %s22 = sphi 0, %s26
      %p23 = scmp.ge.s32.totalorder %s22, 5
      %s30 = sphi 0, %s30
      %s32 = sphi 0, %s30
      %s33 = sphi 0, %s32
      %s47 = sphi 0, %s33
      %s53 = sphi 0, %s55
      %s56 = sphi 0, %s53
      %s57 = sphi 0, %s56
      %s73 = sphi 0, %s57
    $region4: #{tpu_custom_call.1} parent=1 // loop_header_branch
      %25 = sbr.rel (%p23) target = $region8
    $region5: #{tpu_custom_call.1} parent=1 // loop_body
      %s27 = ssub.s32 %s22, 1
      %s28 = ssub.s32 %s22, 2
      %s29 = sadd.s32 %s22, 1
      %s31 = sadd.s32 %s30, 1
      %p34 = scmp.eq.s32.totalorder %s22, 2
      %p35 = scmp.ne.s32.totalorder %s30, %s32
      %p36 = scmp.eq.s32.totalorder %s22, 0
      %p37 = por %p35, %p36
      %p38 = scmp.ne.s32.totalorder %s30, %s32
      %p39 = scmp.eq.s32.totalorder %s27, 2
      %p40 = por %p38, %p39
      %p41 = scmp.ne.s32.totalorder %s32, %s33
      %p42 = scmp.eq.s32.totalorder %s27, 0
      %p43 = por %p41, %p42
      %p44 = scmp.ne.s32.totalorder %s32, %s33
      %p45 = scmp.eq.s32.totalorder %s28, 2
      %p46 = por %p44, %p45
      %p48 = scmp.ne.s32.totalorder %s33, %s47
      %p49 = scmp.eq.s32.totalorder %s28, 0
      %p50 = por %p48, %p49
      %s51 = ssub.s32 %s22, %s29
      %p52 = scmp.eq.s32.totalorder %s51, 0
      %s54 = sadd.s32 %s53, 1
      %s55 = scalar_select %p52, %s53, %s54
      %p58 = pneg %p52
      %p59 = scmp.eq.s32.totalorder %s22, 2
      %p60 = por %p58, %p59
      %p61 = scmp.ne.s32.totalorder %s53, %s56
      %p62 = scmp.eq.s32.totalorder %s22, 0
      %p63 = por %p61, %p62
      %p64 = scmp.ne.s32.totalorder %s53, %s56
      %p65 = scmp.eq.s32.totalorder %s27, 2
      %p66 = por %p64, %p65
      %p67 = scmp.ne.s32.totalorder %s56, %s57
      %p68 = scmp.eq.s32.totalorder %s27, 0
      %p69 = por %p67, %p68
      %p70 = scmp.ne.s32.totalorder %s56, %s57
      %p71 = scmp.eq.s32.totalorder %s28, 2
      %p72 = por %p70, %p71
      %p74 = scmp.ne.s32.totalorder %s57, %s73
      %p75 = scmp.eq.s32.totalorder %s28, 0
      %p76 = por %p74, %p75
      %p77 = scmp.le.s32.totalorder 1, %s22
      %p78 = scmp.lt.s32.totalorder %s22, 4
      %p79 = pnand %p77, %p78
      %p80 = pneg %p79
      // Predicated region
      $region9: #{tpu_custom_call.1} parent=5 // pred_check
        _
      $region10: #{tpu_custom_call.1} parent=5 // pred_check_branch
        %82 = sbr.rel (%p79) target = $region12
      $region11: #{tpu_custom_call.1} parent=5 // pred_region
        %s83 = ssub.s32 %s22, 1
        // Predicated region
        $region13: #{tpu_custom_call.1} parent=11 // pred_check
          %p84 = pneg %p43
        $region14: #{tpu_custom_call.1} parent=11 // pred_check_branch
          %86 = sbr.rel (%p84) target = $region16
        $region15: #{tpu_custom_call.1} parent=11 // pred_region
          _
        $region16: #{tpu_custom_call.1} parent=11 // pred_fallthru
          _
      $region12: #{tpu_custom_call.1} parent=5 // pred_fallthru
        _
      %p87 = scmp.lt.s32.totalorder %s22, 3
      // Predicated region
      $region17: #{tpu_custom_call.1} parent=5 // pred_check
        %p88 = pneg %p87
      $region18: #{tpu_custom_call.1} parent=5 // pred_check_branch
        %90 = sbr.rel (%p88) target = $region20
      $region19: #{tpu_custom_call.1} parent=5 // pred_region
        _
      $region20: #{tpu_custom_call.1} parent=5 // pred_fallthru
        _
      %p91 = scmp.le.s32.totalorder 1, %s22
      %p92 = scmp.lt.s32.totalorder %s22, 4
      %p93 = pnand %p91, %p92
      %p94 = pneg %p93
      // Predicated region
      $region21: #{tpu_custom_call.1} parent=5 // pred_check
        _
      $region22: #{tpu_custom_call.1} parent=5 // pred_check_branch
        %96 = sbr.rel (%p93) target = $region24
      $region23: #{tpu_custom_call.1} parent=5 // pred_region
        %s97 = ssub.s32 %s22, 1
        %p98 = pneg %p43
        %p99 = pneg %p40
        %p100 = pneg %p69
        %p101 = pneg %p66
        %s102 = sand.u32 %s56, 1
        %s103 = scalar_lea.sflag [#allocation6], %s102
        %s104 = sand.u32 %s56, 1
        %s105 = smul.addr %s104, 8
        %s106 = scalar_lea.vmem [#allocation5], %s105
        %s107 = smul.u32 %s27, 8
        %s108 = sld [smem:[#allocation3 + %s107]]
        %s109 = smul.u32 %s108, 4
        %s110 = sld [smem:[#allocation4 + %s109]]
        %s111 = scalar_lea.vmem %s2, %s110
        %v112 = vld [vmem:[%s111] sm:$0x1]
        %s113 = sadd.s32 %s109, 1
        %s114 = sld [smem:[#allocation4 + %s113]]
        %s115 = scalar_lea.vmem %s2, %s114
        %v116 = vld [vmem:[%s115] sm:$0x1]
        %s117 = sadd.s32 %s109, 2
        %s118 = sld [smem:[#allocation4 + %s117]]
        %s119 = scalar_lea.vmem %s2, %s118
        %v120 = vld [vmem:[%s119] sm:$0x1]
        %s121 = sadd.s32 %s109, 3
        %s122 = sld [smem:[#allocation4 + %s121]]
        %s123 = scalar_lea.vmem %s2, %s122
        %v124 = vld [vmem:[%s123] sm:$0x1]
        %126 = vrot.lane.b32.xlu0 %v116, 8
        %v127 = vpop.permute.xlu0 %126
        %130 = vrot.lane.b32.xlu0 %v120, 16
        %v131 = vpop.permute.xlu0 %130
        %134 = vrot.lane.b32.xlu0 %v124, 24
        %v135 = vpop.permute.xlu0 %134
        %vm137 = vcmask 64512
        %v138 = vsel %vm137, %v112, %v127
        %vm139 = vcmask 130048
        %v140 = vsel %vm139, %v138, %v131
        %vm141 = vcmask 195584
        %v142 = vsel %vm141, %v140, %v135
        %vm143 = vcmask 253952
        %144 = vst.msk [vmem:[%s106] sm:$0x1] %vm143, %v142
        %s145 = sadd.s32 %s107, 1
        %s146 = sld [smem:[#allocation3 + %s145]]
        %s147 = smul.u32 %s146, 4
        %s148 = sld [smem:[#allocation4 + %s147]]
        %s149 = scalar_lea.vmem %s2, %s148
        %v150 = vld [vmem:[%s149] sm:$0x1]
        %s151 = sadd.s32 %s147, 1
        %s152 = sld [smem:[#allocation4 + %s151]]
        %s153 = scalar_lea.vmem %s2, %s152
        %v154 = vld [vmem:[%s153] sm:$0x1]
        %s155 = sadd.s32 %s147, 2
        %s156 = sld [smem:[#allocation4 + %s155]]
        %s157 = scalar_lea.vmem %s2, %s156
        %v158 = vld [vmem:[%s157] sm:$0x1]
        %s159 = sadd.s32 %s147, 3
        %s160 = sld [smem:[#allocation4 + %s159]]
        %s161 = scalar_lea.vmem %s2, %s160
        %v162 = vld [vmem:[%s161] sm:$0x1]
        %164 = vrot.lane.b32.xlu0 %v154, 8
        %v165 = vpop.permute.xlu0 %164
        %168 = vrot.lane.b32.xlu0 %v158, 16
        %v169 = vpop.permute.xlu0 %168
        %172 = vrot.lane.b32.xlu0 %v162, 24
        %v173 = vpop.permute.xlu0 %172
        %v175 = vsel %vm137, %v150, %v165
        %v176 = vsel %vm139, %v175, %v169
        %v177 = vsel %vm141, %v176, %v173
        %178 = vst.msk [vmem:[%s106 + $0x1] sm:$0x1] %vm143, %v177
        %s179 = sadd.s32 %s107, 2
        %s180 = sld [smem:[#allocation3 + %s179]]
        %s181 = smul.u32 %s180, 4
        %s182 = sld [smem:[#allocation4 + %s181]]
        %s183 = scalar_lea.vmem %s2, %s182
        %v184 = vld [vmem:[%s183] sm:$0x1]
        %s185 = sadd.s32 %s181, 1
        %s186 = sld [smem:[#allocation4 + %s185]]
        %s187 = scalar_lea.vmem %s2, %s186
        %v188 = vld [vmem:[%s187] sm:$0x1]
        %s189 = sadd.s32 %s181, 2
        %s190 = sld [smem:[#allocation4 + %s189]]
        %s191 = scalar_lea.vmem %s2, %s190
        %v192 = vld [vmem:[%s191] sm:$0x1]
        %s193 = sadd.s32 %s181, 3
        %s194 = sld [smem:[#allocation4 + %s193]]
        %s195 = scalar_lea.vmem %s2, %s194
        %v196 = vld [vmem:[%s195] sm:$0x1]
        %198 = vrot.lane.b32.xlu0 %v188, 8
        %v199 = vpop.permute.xlu0 %198
        %202 = vrot.lane.b32.xlu0 %v192, 16
        %v203 = vpop.permute.xlu0 %202
        %206 = vrot.lane.b32.xlu0 %v196, 24
        %v207 = vpop.permute.xlu0 %206
        %v209 = vsel %vm137, %v184, %v199
        %v210 = vsel %vm139, %v209, %v203
        %v211 = vsel %vm141, %v210, %v207
        %212 = vst.msk [vmem:[%s106 + $0x2] sm:$0x1] %vm143, %v211
        %s213 = sadd.s32 %s107, 3
        %s214 = sld [smem:[#allocation3 + %s213]]
        %s215 = smul.u32 %s214, 4
        %s216 = sld [smem:[#allocation4 + %s215]]
        %s217 = scalar_lea.vmem %s2, %s216
        %v218 = vld [vmem:[%s217] sm:$0x1]
        %s219 = sadd.s32 %s215, 1
        %s220 = sld [smem:[#allocation4 + %s219]]
        %s221 = scalar_lea.vmem %s2, %s220
        %v222 = vld [vmem:[%s221] sm:$0x1]
        %s223 = sadd.s32 %s215, 2
        %s224 = sld [smem:[#allocation4 + %s223]]
        %s225 = scalar_lea.vmem %s2, %s224
        %v226 = vld [vmem:[%s225] sm:$0x1]
        %s227 = sadd.s32 %s215, 3
        %s228 = sld [smem:[#allocation4 + %s227]]
        %s229 = scalar_lea.vmem %s2, %s228
        %v230 = vld [vmem:[%s229] sm:$0x1]
        %232 = vrot.lane.b32.xlu0 %v222, 8
        %v233 = vpop.permute.xlu0 %232
        %236 = vrot.lane.b32.xlu0 %v226, 16
        %v237 = vpop.permute.xlu0 %236
        %240 = vrot.lane.b32.xlu0 %v230, 24
        %v241 = vpop.permute.xlu0 %240
        %v243 = vsel %vm137, %v218, %v233
        %v244 = vsel %vm139, %v243, %v237
        %v245 = vsel %vm141, %v244, %v241
        %246 = vst.msk [vmem:[%s106 + $0x3] sm:$0x1] %vm143, %v245
        %s247 = sadd.s32 %s107, 4
        %s248 = sld [smem:[#allocation3 + %s247]]
        %s249 = smul.u32 %s248, 4
        %s250 = sld [smem:[#allocation4 + %s249]]
        %s251 = scalar_lea.vmem %s2, %s250
        %v252 = vld [vmem:[%s251] sm:$0x1]
        %s253 = sadd.s32 %s249, 1
        %s254 = sld [smem:[#allocation4 + %s253]]
        %s255 = scalar_lea.vmem %s2, %s254
        %v256 = vld [vmem:[%s255] sm:$0x1]
        %s257 = sadd.s32 %s249, 2
        %s258 = sld [smem:[#allocation4 + %s257]]
        %s259 = scalar_lea.vmem %s2, %s258
        %v260 = vld [vmem:[%s259] sm:$0x1]
        %s261 = sadd.s32 %s249, 3
        %s262 = sld [smem:[#allocation4 + %s261]]
        %s263 = scalar_lea.vmem %s2, %s262
        %v264 = vld [vmem:[%s263] sm:$0x1]
        %266 = vrot.lane.b32.xlu0 %v256, 8
        %v267 = vpop.permute.xlu0 %266
        %270 = vrot.lane.b32.xlu0 %v260, 16
        %v271 = vpop.permute.xlu0 %270
        %274 = vrot.lane.b32.xlu0 %v264, 24
        %v275 = vpop.permute.xlu0 %274
        %v277 = vsel %vm137, %v252, %v267
        %v278 = vsel %vm139, %v277, %v271
        %v279 = vsel %vm141, %v278, %v275
        %280 = vst.msk [vmem:[%s106 + $0x4] sm:$0x1] %vm143, %v279
        %s281 = sadd.s32 %s107, 5
        %s282 = sld [smem:[#allocation3 + %s281]]
        %s283 = smul.u32 %s282, 4
        %s284 = sld [smem:[#allocation4 + %s283]]
        %s285 = scalar_lea.vmem %s2, %s284
        %v286 = vld [vmem:[%s285] sm:$0x1]
        %s287 = sadd.s32 %s283, 1
        %s288 = sld [smem:[#allocation4 + %s287]]
        %s289 = scalar_lea.vmem %s2, %s288
        %v290 = vld [vmem:[%s289] sm:$0x1]
        %s291 = sadd.s32 %s283, 2
        %s292 = sld [smem:[#allocation4 + %s291]]
        %s293 = scalar_lea.vmem %s2, %s292
        %v294 = vld [vmem:[%s293] sm:$0x1]
        %s295 = sadd.s32 %s283, 3
        %s296 = sld [smem:[#allocation4 + %s295]]
        %s297 = scalar_lea.vmem %s2, %s296
        %v298 = vld [vmem:[%s297] sm:$0x1]
        %300 = vrot.lane.b32.xlu0 %v290, 8
        %v301 = vpop.permute.xlu0 %300
        %304 = vrot.lane.b32.xlu0 %v294, 16
        %v305 = vpop.permute.xlu0 %304
        %308 = vrot.lane.b32.xlu0 %v298, 24
        %v309 = vpop.permute.xlu0 %308
        %v311 = vsel %vm137, %v286, %v301
        %v312 = vsel %vm139, %v311, %v305
        %v313 = vsel %vm141, %v312, %v309
        %314 = vst.msk [vmem:[%s106 + $0x5] sm:$0x1] %vm143, %v313
        %s315 = sadd.s32 %s107, 6
        %s316 = sld [smem:[#allocation3 + %s315]]
        %s317 = smul.u32 %s316, 4
        %s318 = sld [smem:[#allocation4 + %s317]]
        %s319 = scalar_lea.vmem %s2, %s318
        %v320 = vld [vmem:[%s319] sm:$0x1]
        %s321 = sadd.s32 %s317, 1
        %s322 = sld [smem:[#allocation4 + %s321]]
        %s323 = scalar_lea.vmem %s2, %s322
        %v324 = vld [vmem:[%s323] sm:$0x1]
        %s325 = sadd.s32 %s317, 2
        %s326 = sld [smem:[#allocation4 + %s325]]
        %s327 = scalar_lea.vmem %s2, %s326
        %v328 = vld [vmem:[%s327] sm:$0x1]
        %s329 = sadd.s32 %s317, 3
        %s330 = sld [smem:[#allocation4 + %s329]]
        %s331 = scalar_lea.vmem %s2, %s330
        %v332 = vld [vmem:[%s331] sm:$0x1]
        %334 = vrot.lane.b32.xlu0 %v324, 8
        %v335 = vpop.permute.xlu0 %334
        %338 = vrot.lane.b32.xlu0 %v328, 16
        %v339 = vpop.permute.xlu0 %338
        %342 = vrot.lane.b32.xlu0 %v332, 24
        %v343 = vpop.permute.xlu0 %342
        %v345 = vsel %vm137, %v320, %v335
        %v346 = vsel %vm139, %v345, %v339
        %v347 = vsel %vm141, %v346, %v343
        %348 = vst.msk [vmem:[%s106 + $0x6] sm:$0x1] %vm143, %v347
        %s349 = sadd.s32 %s107, 7
        %s350 = sld [smem:[#allocation3 + %s349]]
        %s351 = smul.u32 %s350, 4
        %s352 = sld [smem:[#allocation4 + %s351]]
        %s353 = scalar_lea.vmem %s2, %s352
        %v354 = vld [vmem:[%s353] sm:$0x1]
        %s355 = sadd.s32 %s351, 1
        %s356 = sld [smem:[#allocation4 + %s355]]
        %s357 = scalar_lea.vmem %s2, %s356
        %v358 = vld [vmem:[%s357] sm:$0x1]
        %s359 = sadd.s32 %s351, 2
        %s360 = sld [smem:[#allocation4 + %s359]]
        %s361 = scalar_lea.vmem %s2, %s360
        %v362 = vld [vmem:[%s361] sm:$0x1]
        %s363 = sadd.s32 %s351, 3
        %s364 = sld [smem:[#allocation4 + %s363]]
        %s365 = scalar_lea.vmem %s2, %s364
        %v366 = vld [vmem:[%s365] sm:$0x1]
        %368 = vrot.lane.b32.xlu0 %v358, 8
        %v369 = vpop.permute.xlu0 %368
        %372 = vrot.lane.b32.xlu0 %v362, 16
        %v373 = vpop.permute.xlu0 %372
        %376 = vrot.lane.b32.xlu0 %v366, 24
        %v377 = vpop.permute.xlu0 %376
        %v379 = vsel %vm137, %v354, %v369
        %v380 = vsel %vm139, %v379, %v373
        %v381 = vsel %vm141, %v380, %v377
        %382 = vst.msk [vmem:[%s106 + $0x7] sm:$0x1] %vm143, %v381
        %s383 = sand.u32 %s56, 1
        %s384 = scalar_lea.sflag [#allocation6], %s383
        %s385 = sand.u32 %s56, 1
        %s386 = smul.addr %s385, 8
        %s387 = scalar_lea.vmem [#allocation5], %s386
        // Predicated region
        $region25: #{tpu_custom_call.1} parent=23 // pred_check
          %p388 = pneg %p66
        $region26: #{tpu_custom_call.1} parent=23 // pred_check_branch
          %390 = sbr.rel (%p388) target = $region28
        $region27: #{tpu_custom_call.1} parent=23 // pred_region
          %s392 = ssub.s32 128, 128
          %393 = vsyncadd %s384, %s392
          %s394 = smul.addr %s27, 128
          %s395 = scalar_lea.hbm %s3, %s394
          %s397 = sshll.u32 %s387, 4
          %s398 = int_to_ptr.vmem [resolvable:$true] %s397
          %400 = dma.vmem_to_hbm [thread:$0]  %s398, 128, %s395, %s384
        $region28: #{tpu_custom_call.1} parent=23 // pred_fallthru
          _
      $region24: #{tpu_custom_call.1} parent=5 // pred_fallthru
        _
      %p401 = scmp.le.s32.totalorder 2, %s22
      // Predicated region
      $region29: #{tpu_custom_call.1} parent=5 // pred_check
        %p402 = pneg %p401
      $region30: #{tpu_custom_call.1} parent=5 // pred_check_branch
        %404 = sbr.rel (%p402) target = $region32
      $region31: #{tpu_custom_call.1} parent=5 // pred_region
        %s405 = ssub.s32 %s22, 2
        // Predicated region
        $region33: #{tpu_custom_call.1} parent=31 // pred_check
          %p406 = pneg %p72
        $region34: #{tpu_custom_call.1} parent=31 // pred_check_branch
          %408 = sbr.rel (%p406) target = $region36
        $region35: #{tpu_custom_call.1} parent=31 // pred_region
          %s409 = sand.u32 %s57, 1
          %s410 = scalar_lea.sflag [#allocation6], %s409
          %s411 = sand.u32 %s57, 1
          %s412 = smul.addr %s411, 8
          %s413 = scalar_lea.vmem [#allocation5], %s412
          %414 = dma.done %s410, 128
        $region36: #{tpu_custom_call.1} parent=31 // pred_fallthru
          _
      $region32: #{tpu_custom_call.1} parent=5 // pred_fallthru
        _
    $region6: #{tpu_custom_call.1} parent=1 // loop_footer
      %s26 = sadd.s32 1, %s22
    $region7: #{tpu_custom_call.1} parent=1 // loop_footer_branch
      %21 = sbr.rel target = $region3
    $region8: #{tpu_custom_call.1} parent=1 // loop_exit
      _
    %415 = vsyncpa [#allocation6], 1
    %s416 = scalar_lea.sflag [#allocation6], 1
    %417 = vsyncpa %s416, 1

</llo_original>
